<compile_context>
chip_gen: v5e
topology: v5e:2x2
jax: 0.10.0
libtpu: 0.0.40
codegen_flags: <defaults>
</compile_context>

<pallas_src>
from functools import partial

import jax
import jax.numpy as jnp
from jax.experimental import pallas as pl
from jax.experimental.pallas import tpu as pltpu


def policy_kernel(x_ref, w1_ref, b1_ref, w2_ref, b2_ref, w3_ref, b3_ref,
                  probs_ref):
    # x: (in_dim, TB) f32, batch on the lane axis.
    x = x_ref[...]

    # layer1 + relu : (32, in_dim) @ (in_dim, TB) -> (32, TB)
    h1 = jnp.dot(w1_ref[...], x, preferred_element_type=jnp.float32)
    h1 = jnp.maximum(h1 + b1_ref[...], 0.0)

    # layer2 + relu : (16, 32) @ (32, TB) -> (16, TB)
    h2 = jnp.dot(w2_ref[...], h1, preferred_element_type=jnp.float32)
    h2 = jnp.maximum(h2 + b2_ref[...], 0.0)

    # layer3 -> logits : (out_dim, 16) @ (16, TB) -> (out_dim, TB)
    logits = jnp.dot(w3_ref[...], h2, preferred_element_type=jnp.float32)
    logits = logits + b3_ref[...]

    # numerically stable softmax over the feature (sublane) axis
    m = jnp.max(logits, axis=0, keepdims=True)          # (1, TB)
    e = jnp.exp(logits - m)                              # (out_dim, TB)
    s = jnp.sum(e, axis=0, keepdims=True)                # (1, TB)
    probs_ref[...] = e / s                               # lane-dense store

    # TODO(synk): torch.distributions.Categorical has no Pallas equivalent;
    # the returned action_probs fully parameterize it (sample outside).


def _round_up(x, m):
    return ((x + m - 1) // m) * m


@partial(jax.jit, static_argnames=("tb",))
def _policy_forward_impl(obs, params, tb):
    B, in_dim = obs.shape
    out_dim = params["w3"].shape[0]

    # Pad the batch only to the 128-lane multiple (minimal padding); the
    # transpose + pad fuse into a single XLA pass under jit.
    B_pad = _round_up(B, 128)
    x_t = jnp.pad(obs.T, ((0, 0), (0, B_pad - B)))       # (in_dim, B_pad) f32

    num_tiles = pl.cdiv(B_pad, tb)                        # last tile may be ragged

    const = lambda shape: pl.BlockSpec(shape, lambda i: (0, 0))  # VMEM-resident

    probs_t = pl.pallas_call(
        policy_kernel,
        out_shape=jax.ShapeDtypeStruct((out_dim, B_pad), jnp.float32),
        grid=(num_tiles,),
        in_specs=[
            pl.BlockSpec((in_dim, tb), lambda i: (0, i)),  # obs^T: batch-tiled
            const(params["w1"].shape), const(params["b1"].shape),
            const(params["w2"].shape), const(params["b2"].shape),
            const(params["w3"].shape), const(params["b3"].shape),
        ],
        out_specs=pl.BlockSpec((out_dim, tb), lambda i: (0, i)),
        compiler_params=pltpu.CompilerParams(
            dimension_semantics=("parallel",),
            vmem_limit_bytes=48 * 1024 * 1024),
    )(x_t, params["w1"], params["b1"], params["w2"], params["b2"],
      params["w3"], params["b3"])

    return probs_t[:, :B].T                               # (B, out_dim)


def policy_forward(obs, params, *, max_tile=16384):
    """obs: (B, in_dim) float32. params: PyTorch-layout weights (out, in),
    biases (out, 1). Returns action_probs (B, out_dim)."""
    B = obs.shape[0]
    tb = min(max_tile, _round_up(B, 128))                 # multiple of 128
    return _policy_forward_impl(obs, params, tb)


def init_params(key, in_dim, out_dim):
    """Deterministic init mimicking nn.Linear default (U(-1/sqrt(fan_in), +)),
    stored in PyTorch (out_features, in_features) layout."""
    dims = [(in_dim, 32), (32, 16), (16, out_dim)]
    params = {}
    keys = jax.random.split(key, 2 * len(dims))
    for i, (fi, fo) in enumerate(dims):
        bound = 1.0 / (fi ** 0.5)
        params[f"w{i+1}"] = jax.random.uniform(
            keys[2 * i], (fo, fi), jnp.float32, -bound, bound)
        params[f"b{i+1}"] = jax.random.uniform(
            keys[2 * i + 1], (fo, 1), jnp.float32, -bound, bound)
    return params


if __name__ == "__main__":
    in_dim, out_dim, batch = 16, 4, 8

    key = jax.random.PRNGKey(0)
    k_params, k_obs = jax.random.split(key)
    params = init_params(k_params, in_dim, out_dim)
    obs = jax.random.normal(k_obs, (batch, in_dim), dtype=jnp.float32)

    action_probs = jax.block_until_ready(policy_forward(obs, params))
    assert action_probs.shape == (batch, out_dim)

    def ref_forward(o):
        h1 = jnp.maximum(o @ params["w1"].T + params["b1"].T, 0.0)
        h2 = jnp.maximum(h1 @ params["w2"].T + params["b2"].T, 0.0)
        logits = h2 @ params["w3"].T + params["b3"].T
        return jax.nn.softmax(logits, axis=-1)

    # f32 end-to-end; loose atol only covers MXU-vs-XLA matmul pass differences.
    ref = ref_forward(obs)
    assert jnp.allclose(action_probs, ref, atol=1e-2), "mismatch vs reference"
    assert jnp.allclose(jnp.sum(action_probs, axis=-1), 1.0, atol=1e-4)

    # Exercise the multi-tile + ragged-last-tile path (B_pad not a multiple
    # of the tile) to validate the cdiv grid / masked-writeback logic.
    big_B = 1000
    obs_big = jax.random.normal(jax.random.PRNGKey(1), (big_B, in_dim),
                                dtype=jnp.float32)
    probs_big = jax.block_until_ready(
        policy_forward(obs_big, params, max_tile=384))
    assert probs_big.shape == (big_B, out_dim)
    assert jnp.allclose(probs_big, ref_forward(obs_big), atol=1e-2), \
        "mismatch (big batch)"
    assert jnp.allclose(jnp.sum(probs_big, axis=-1), 1.0, atol=1e-4)

    print("KERNEL_OK")
</pallas_src>

<mosaic_0001>
module attributes {stable_mosaic.version = 11 : i64} {
  func.func @policy_kernel(%arg0: i32, %arg1: memref<16x128xf32, #tpu.memory_space<vmem>>, %arg2: memref<32x16xf32, #tpu.memory_space<vmem>>, %arg3: memref<32x1xf32, #tpu.memory_space<vmem>>, %arg4: memref<16x32xf32, #tpu.memory_space<vmem>>, %arg5: memref<16x1xf32, #tpu.memory_space<vmem>>, %arg6: memref<4x16xf32, #tpu.memory_space<vmem>>, %arg7: memref<4x1xf32, #tpu.memory_space<vmem>>, %arg8: memref<4x128xf32, #tpu.memory_space<vmem>>) attributes {dimension_semantics = [#tpu.dimension_semantics<parallel>], iteration_bounds = array<i64: 1>, scalar_prefetch = 0 : i64, scratch_operands = 0 : i64, tpu.core_type = #tpu.core_type<tc>, window_params = [{transform_indices = @transform_0, window_bounds = array<i64: 16, 128>}, {pipeline_mode = #tpu.pipeline_mode<synchronous>, transform_indices = @transform_1, window_bounds = array<i64: 32, 16>}, {pipeline_mode = #tpu.pipeline_mode<synchronous>, transform_indices = @transform_2, window_bounds = array<i64: 32, 1>}, {pipeline_mode = #tpu.pipeline_mode<synchronous>, transform_indices = @transform_3, window_bounds = array<i64: 16, 32>}, {pipeline_mode = #tpu.pipeline_mode<synchronous>, transform_indices = @transform_4, window_bounds = array<i64: 16, 1>}, {pipeline_mode = #tpu.pipeline_mode<synchronous>, transform_indices = @transform_5, window_bounds = array<i64: 4, 16>}, {pipeline_mode = #tpu.pipeline_mode<synchronous>, transform_indices = @transform_6, window_bounds = array<i64: 4, 1>}, {transform_indices = @transform_7, window_bounds = array<i64: 4, 128>}]} {
    %c0 = arith.constant 0 : index
    %c0_0 = arith.constant 0 : index
    %0 = vector.load %arg1[%c0, %c0_0] : memref<16x128xf32, #tpu.memory_space<vmem>>, vector<16x128xf32>
    %c0_1 = arith.constant 0 : index
    %c0_2 = arith.constant 0 : index
    %1 = vector.load %arg2[%c0_1, %c0_2] : memref<32x16xf32, #tpu.memory_space<vmem>>, vector<32x16xf32>
    %cst = arith.constant dense<0.000000e+00> : vector<32x128xf32>
    %2 = tpu.matmul %1, %0, %cst {dimension_numbers = #tpu.dot_dimension_numbers<[1], [0], [0], [1], [0, 0, 1, 1], [], []>} : vector<32x16xf32>, vector<16x128xf32>, vector<32x128xf32> -> vector<32x128xf32>
    %c0_3 = arith.constant 0 : index
    %c0_4 = arith.constant 0 : index
    %3 = vector.load %arg3[%c0_3, %c0_4] : memref<32x1xf32, #tpu.memory_space<vmem>>, vector<32x1xf32>
    %4 = vector.broadcast %3 : vector<32x1xf32> to vector<32x128xf32>
    %5 = arith.addf %2, %4 : vector<32x128xf32>
    %cst_5 = arith.constant 0.000000e+00 : f32
    %6 = vector.broadcast %cst_5 : f32 to vector<32x128xf32>
    %7 = arith.maximumf %5, %6 : vector<32x128xf32>
    %c0_6 = arith.constant 0 : index
    %c0_7 = arith.constant 0 : index
    %8 = vector.load %arg4[%c0_6, %c0_7] : memref<16x32xf32, #tpu.memory_space<vmem>>, vector<16x32xf32>
    %cst_8 = arith.constant dense<0.000000e+00> : vector<16x128xf32>
    %9 = tpu.matmul %8, %7, %cst_8 {dimension_numbers = #tpu.dot_dimension_numbers<[1], [0], [0], [1], [0, 0, 1, 1], [], []>} : vector<16x32xf32>, vector<32x128xf32>, vector<16x128xf32> -> vector<16x128xf32>
    %c0_9 = arith.constant 0 : index
    %c0_10 = arith.constant 0 : index
    %10 = vector.load %arg5[%c0_9, %c0_10] : memref<16x1xf32, #tpu.memory_space<vmem>>, vector<16x1xf32>
    %11 = vector.broadcast %10 : vector<16x1xf32> to vector<16x128xf32>
    %12 = arith.addf %9, %11 : vector<16x128xf32>
    %cst_11 = arith.constant 0.000000e+00 : f32
    %13 = vector.broadcast %cst_11 : f32 to vector<16x128xf32>
    %14 = arith.maximumf %12, %13 : vector<16x128xf32>
    %c0_12 = arith.constant 0 : index
    %c0_13 = arith.constant 0 : index
    %15 = vector.load %arg6[%c0_12, %c0_13] : memref<4x16xf32, #tpu.memory_space<vmem>>, vector<4x16xf32>
    %cst_14 = arith.constant dense<0.000000e+00> : vector<4x128xf32>
    %16 = tpu.matmul %15, %14, %cst_14 {dimension_numbers = #tpu.dot_dimension_numbers<[1], [0], [0], [1], [0, 0, 1, 1], [], []>} : vector<4x16xf32>, vector<16x128xf32>, vector<4x128xf32> -> vector<4x128xf32>
    %c0_15 = arith.constant 0 : index
    %c0_16 = arith.constant 0 : index
    %17 = vector.load %arg7[%c0_15, %c0_16] : memref<4x1xf32, #tpu.memory_space<vmem>>, vector<4x1xf32>
    %18 = vector.broadcast %17 : vector<4x1xf32> to vector<4x128xf32>
    %19 = arith.addf %16, %18 : vector<4x128xf32>
    %cst_17 = arith.constant dense<0xFF800000> : vector<128xf32>
    %20 = vector.multi_reduction <maximumf>, %19, %cst_17 [0] : vector<4x128xf32> to vector<128xf32>
    %21 = vector.shape_cast %20 : vector<128xf32> to vector<1x128xf32>
    %22 = vector.broadcast %21 : vector<1x128xf32> to vector<4x128xf32>
    %23 = arith.subf %19, %22 : vector<4x128xf32>
    %24 = math.exp %23 : vector<4x128xf32>
    %cst_18 = arith.constant dense<0.000000e+00> : vector<128xf32>
    %25 = vector.multi_reduction <add>, %24, %cst_18 [0] : vector<4x128xf32> to vector<128xf32>
    %26 = vector.shape_cast %25 : vector<128xf32> to vector<1x128xf32>
    %27 = vector.broadcast %26 : vector<1x128xf32> to vector<4x128xf32>
    %28 = arith.divf %24, %27 : vector<4x128xf32>
    %c0_19 = arith.constant 0 : index
    %c0_20 = arith.constant 0 : index
    %29 = vector.load %arg8[%c0_19, %c0_20] : memref<4x128xf32, #tpu.memory_space<vmem>>, vector<4x128xf32>
    tpu.vector_store %arg8[%c0_19, %c0_20], %28 {strides = array<i32>} : memref<4x128xf32, #tpu.memory_space<vmem>>, vector<4x128xf32>,
    return
  }
  func.func @transform_0(%arg0: i32) -> (i32, i32) {
    %c0_i32 = arith.constant 0 : i32
    %c0_i32_0 = arith.constant 0 : i32
    return %c0_i32, %arg0 : i32, i32
  }
  func.func @transform_1(%arg0: i32) -> (i32, i32) {
    %c0_i32 = arith.constant 0 : i32
    %c0_i32_0 = arith.constant 0 : i32
    %c0_i32_1 = arith.constant 0 : i32
    return %c0_i32, %c0_i32_0 : i32, i32
  }
  func.func @transform_2(%arg0: i32) -> (i32, i32) {
    %c0_i32 = arith.constant 0 : i32
    %c0_i32_0 = arith.constant 0 : i32
    %c0_i32_1 = arith.constant 0 : i32
    return %c0_i32, %c0_i32_0 : i32, i32
  }
  func.func @transform_3(%arg0: i32) -> (i32, i32) {
    %c0_i32 = arith.constant 0 : i32
    %c0_i32_0 = arith.constant 0 : i32
    %c0_i32_1 = arith.constant 0 : i32
    return %c0_i32, %c0_i32_0 : i32, i32
  }
  func.func @transform_4(%arg0: i32) -> (i32, i32) {
    %c0_i32 = arith.constant 0 : i32
    %c0_i32_0 = arith.constant 0 : i32
    %c0_i32_1 = arith.constant 0 : i32
    return %c0_i32, %c0_i32_0 : i32, i32
  }
  func.func @transform_5(%arg0: i32) -> (i32, i32) {
    %c0_i32 = arith.constant 0 : i32
    %c0_i32_0 = arith.constant 0 : i32
    %c0_i32_1 = arith.constant 0 : i32
    return %c0_i32, %c0_i32_0 : i32, i32
  }
  func.func @transform_6(%arg0: i32) -> (i32, i32) {
    %c0_i32 = arith.constant 0 : i32
    %c0_i32_0 = arith.constant 0 : i32
    %c0_i32_1 = arith.constant 0 : i32
    return %c0_i32, %c0_i32_0 : i32, i32
  }
  func.func @transform_7(%arg0: i32) -> (i32, i32) {
    %c0_i32 = arith.constant 0 : i32
    %c0_i32_0 = arith.constant 0 : i32
    return %c0_i32, %arg0 : i32, i32
  }
}

</mosaic_0001>

<llo_original>
// kernel: _policy_forward_impl.1
$region0: #{_policy_forward_impl.1}
  #allocation0 [shape = 'u32[]', space=smem, size = 0x4, offset = 0x4, fixed_abs, tag = 'smem constant byte address 0x4 - core index']
  #allocation1 [shape = 'u32[72,128]{1,0:T(1,128)}', space=vmem, size = 0x9000, scoped, tag = 'internal scratch']
  %s0 = inlined_call_operand.vmem [shape: f32[16,128], index: 0, kind: input, shape index: {}]
  %s1 = inlined_call_operand.vmem [shape: f32[32,16], index: 1, kind: input, shape index: {}]
  %s2 = inlined_call_operand.vmem [shape: f32[32,1], index: 2, kind: input, shape index: {}]
  %s3 = inlined_call_operand.vmem [shape: f32[16,32], index: 3, kind: input, shape index: {}]
  %s4 = inlined_call_operand.vmem [shape: f32[16,1], index: 4, kind: input, shape index: {}]
  %s5 = inlined_call_operand.vmem [shape: f32[4,16], index: 5, kind: input, shape index: {}]
  %s6 = inlined_call_operand.vmem [shape: f32[4,1], index: 6, kind: input, shape index: {}]
  %s7 = inlined_call_operand.vmem [shape: f32[4,128], index: 7, kind: output, shape index: {}]
  %s8 = sld [smem:[#allocation0]]
  $region38: #{_policy_forward_impl.1} parent=0
    _
  %s10 = ssub.s32 1, %s8
  %s11 = scalar_select 0, %s10, %s8
  // Predicated region
  $region2: #{_policy_forward_impl.1} parent=0 // pred_check
    _
  $region3: #{_policy_forward_impl.1} parent=0 // pred_check_branch
    %13 = sbr.rel (0) target = $region5
  $region4: #{_policy_forward_impl.1} parent=0 // pred_region
    _
  $region5: #{_policy_forward_impl.1} parent=0 // pred_fallthru
    _
  // Predicated region
  $region6: #{_policy_forward_impl.1} parent=0 // pred_check
    _
  $region7: #{_policy_forward_impl.1} parent=0 // pred_check_branch
    %15 = sbr.rel (0) target = $region9
  $region8: #{_policy_forward_impl.1} parent=0 // pred_region
    _
  $region9: #{_policy_forward_impl.1} parent=0 // pred_fallthru
    _
  // Predicated region
  $region10: #{_policy_forward_impl.1} parent=0 // pred_check
    _
  $region11: #{_policy_forward_impl.1} parent=0 // pred_check_branch
    %17 = sbr.rel (0) target = $region13
  $region12: #{_policy_forward_impl.1} parent=0 // pred_region
    _
  $region13: #{_policy_forward_impl.1} parent=0 // pred_fallthru
    _
  // Predicated region
  $region14: #{_policy_forward_impl.1} parent=0 // pred_check
    _
  $region15: #{_policy_forward_impl.1} parent=0 // pred_check_branch
    %19 = sbr.rel (0) target = $region17
  $region16: #{_policy_forward_impl.1} parent=0 // pred_region
    _
  $region17: #{_policy_forward_impl.1} parent=0 // pred_fallthru
    _
  // Predicated region
  $region18: #{_policy_forward_impl.1} parent=0 // pred_check
    _
  $region19: #{_policy_forward_impl.1} parent=0 // pred_check_branch
    %21 = sbr.rel (0) target = $region21
  $region20: #{_policy_forward_impl.1} parent=0 // pred_region
    _
  $region21: #{_policy_forward_impl.1} parent=0 // pred_fallthru
    _
  // Predicated region
  $region22: #{_policy_forward_impl.1} parent=0 // pred_check
    _
  $region23: #{_policy_forward_impl.1} parent=0 // pred_check_branch
    %23 = sbr.rel (0) target = $region25
  $region24: #{_policy_forward_impl.1} parent=0 // pred_region
    _
  $region25: #{_policy_forward_impl.1} parent=0 // pred_fallthru
    _
  // Predicated region
  $region26: #{_policy_forward_impl.1} parent=0 // pred_check
    _
  $region27: #{_policy_forward_impl.1} parent=0 // pred_check_branch
    %25 = sbr.rel (0) target = $region29
  $region28: #{_policy_forward_impl.1} parent=0 // pred_region
    _
  $region29: #{_policy_forward_impl.1} parent=0 // pred_fallthru
    _
  %v26 = vld [vmem:[%s0] sm:$0xff]
  %v27 = vld [vmem:[%s0 + $0x8] sm:$0xff]
  %v28 = vld [vmem:[%s1] sm:$0xff]
  %v29 = vld [vmem:[%s1 + $0x8] sm:$0xff]
  %v30 = vld [vmem:[%s1 + $0x10] sm:$0xff]
  %v31 = vld [vmem:[%s1 + $0x18] sm:$0xff]
  %v32 = vld [vmem:[%s2] sm:$0xff]
  %v33 = vld [vmem:[%s2 + $0x8] sm:$0xff]
  %v34 = vld [vmem:[%s2 + $0x10] sm:$0xff]
  %v35 = vld [vmem:[%s2 + $0x18] sm:$0xff]
  %37 = vset.pattern.permute.xlu0 0
  %38 = vperm.xlu0 %37, %v32
  %v39 = vpop.permute.xlu0 %38
  %42 = vset.pattern.permute.xlu0 0
  %43 = vperm.xlu0 %42, %v33
  %v44 = vpop.permute.xlu0 %43
  %47 = vset.pattern.permute.xlu0 0
  %48 = vperm.xlu0 %47, %v34
  %v49 = vpop.permute.xlu0 %48
  %52 = vset.pattern.permute.xlu0 0
  %53 = vperm.xlu0 %52, %v35
  %v54 = vpop.permute.xlu0 %53
  %vm56 = vcmask 130048
  %v58 = vsel %vm56, %v28, 0
  %v61 = vsel %vm56, %v29, 0
  %v64 = vsel %vm56, %v30, 0
  %v67 = vsel %vm56, %v31, 0
  %69 = vmatpush.msra.mxu0 0.0
  %70 = vmatpush.msra.mxu0 0.0
  %71 = vmatpush.msra.mxu0 0.0
  %72 = vmatpush.msra.mxu0 0.0
  %73 = vmatpush.msra.mxu0 0.0
  %74 = vmatpush.msra.mxu0 0.0
  %75 = vmatpush.msra.mxu0 0.0
  %76 = vmatpush.msra.mxu0 0.0
  %77 = vmatpush.msra.mxu0 0.0
  %78 = vmatpush.msra.mxu0 0.0
  %79 = vmatpush.msra.mxu0 0.0
  %80 = vmatpush.msra.mxu0 0.0
  %81 = vmatpush.msra.mxu0 0.0
  %82 = vmatpush.msra.mxu0 0.0
  %83 = vmatpush.msra.mxu0 %v27
  %84 = vmatpush.msra.mxu0 %v26
  %85 = vmatmul.f32.gmra.mxu0 %v58
  %v86 = vpop.f32.mrf.mxu0
  %v87 = vadd.f32 %v39, %v86
  %88 = vmatmul.f32.gmra.mxu0 %v61
  %v89 = vpop.f32.mrf.mxu0
  %v90 = vadd.f32 %v44, %v89
  %91 = vmatmul.f32.gmra.mxu0 %v64
  %v92 = vpop.f32.mrf.mxu0
  %v93 = vadd.f32 %v49, %v92
  %94 = vmatmul.f32.gmra.mxu0 %v67
  %v95 = vpop.f32.mrf.mxu0
  %v96 = vadd.f32 %v54, %v95
  %97 = vdwg.mxu0
  %v98 = vmax.f32 %v87, 0.0
  %v99 = vmax.f32 %v90, 0.0
  %v100 = vmax.f32 %v93, 0.0
  %v101 = vmax.f32 %v96, 0.0
  %v102 = vld [vmem:[%s3] sm:$0xff]
  %v103 = vld [vmem:[%s3 + $0x8] sm:$0xff]
  %v104 = vld [vmem:[%s4] sm:$0xff]
  %v105 = vld [vmem:[%s4 + $0x8] sm:$0xff]
  %107 = vset.pattern.permute.xlu0 0
  %108 = vperm.xlu0 %107, %v104
  %v109 = vpop.permute.xlu0 %108
  %112 = vset.pattern.permute.xlu0 0
  %113 = vperm.xlu0 %112, %v105
  %v114 = vpop.permute.xlu0 %113
  %vm116 = vcmask 261120
  %v118 = vsel %vm116, %v102, 0
  %v121 = vsel %vm116, %v103, 0
  %123 = vmatpush.msra.mxu0 0.0
  %124 = vmatpush.msra.mxu0 0.0
  %125 = vmatpush.msra.mxu0 0.0
  %126 = vmatpush.msra.mxu0 0.0
  %127 = vmatpush.msra.mxu0 0.0
  %128 = vmatpush.msra.mxu0 0.0
  %129 = vmatpush.msra.mxu0 0.0
  %130 = vmatpush.msra.mxu0 0.0
  %131 = vmatpush.msra.mxu0 0.0
  %132 = vmatpush.msra.mxu0 0.0
  %133 = vmatpush.msra.mxu0 0.0
  %134 = vmatpush.msra.mxu0 0.0
  %135 = vmatpush.msra.mxu0 %v101
  %136 = vmatpush.msra.mxu0 %v100
  %137 = vmatpush.msra.mxu0 %v99
  %138 = vmatpush.msra.mxu0 %v98
  %139 = vmatmul.f32.gmra.mxu0 %v118
  %v140 = vpop.f32.mrf.mxu0
  %v141 = vadd.f32 %v109, %v140
  %142 = vmatmul.f32.gmra.mxu0 %v121
  %v143 = vpop.f32.mrf.mxu0
  %v144 = vadd.f32 %v114, %v143
  %145 = vdwg.mxu0
  %v146 = vmax.f32 %v141, 0.0
  %v147 = vmax.f32 %v144, 0.0
  %v148 = vld [vmem:[%s5] sm:$0xf]
  %v149 = vld [vmem:[%s6] sm:$0xf]
  %151 = vset.pattern.permute.xlu0 0
  %152 = vperm.xlu0 %151, %v149
  %v153 = vpop.permute.xlu0 %152
  %v156 = vsel %vm56, %v148, 0
  %158 = vmatpush.msra.mxu0 0.0
  %159 = vmatpush.msra.mxu0 0.0
  %160 = vmatpush.msra.mxu0 0.0
  %161 = vmatpush.msra.mxu0 0.0
  %162 = vmatpush.msra.mxu0 0.0
  %163 = vmatpush.msra.mxu0 0.0
  %164 = vmatpush.msra.mxu0 0.0
  %165 = vmatpush.msra.mxu0 0.0
  %166 = vmatpush.msra.mxu0 0.0
  %167 = vmatpush.msra.mxu0 0.0
  %168 = vmatpush.msra.mxu0 0.0
  %169 = vmatpush.msra.mxu0 0.0
  %170 = vmatpush.msra.mxu0 0.0
  %171 = vmatpush.msra.mxu0 0.0
  %172 = vmatpush.msra.mxu0 %v147
  %173 = vmatpush.msra.mxu0 %v146
  %174 = vmatmul.f32.gmra.mxu0 %v156
  %v175 = vpop.f32.mrf.mxu0
  %v176 = vadd.f32 %v153, %v175
  %177 = vdwg.mxu0
  %vm178 = vcmask 1043456
  %v179 = vsel %vm178, %v176, -inf
  %v180 = vrot.slane %v179, 4
  %v181 = vmax.f32 %v179, %v180
  %v182 = vrot.slane %v181, 2
  %v183 = vmax.f32 %v181, %v182
  %v184 = vrot.slane %v183, 1
  %v185 = vmax.f32 %v183, %v184
  %v186 = vsub.f32 %v176, %v185
  %v187 = vmul.f32 %v186, 1.442695
  %v188 = vpow.pop %v187
  %v189 = vsel %vm178, %v188, 0.0
  %v190 = vrot.slane %v189, 4
  %v191 = vadd.f32 %v189, %v190
  %v192 = vrot.slane %v191, 2
  %v193 = vadd.f32 %v191, %v192
  %v194 = vrot.slane %v193, 1
  %v195 = vadd.f32 %v193, %v194
  %v196 = vrcp.pop %v195
  %v197 = vmul.f32 %v195, %v196
  %v198 = vsub.f32 1.0, %v197
  %v199 = vmul.f32 %v196, %v198
  %v200 = vadd.f32 %v196, %v199
  %vm201 = vweird.f32 %v195
  %vm202 = vweird.f32 %v196
  %vm203 = vmor %vm201, %vm202
  %v204 = vsel %vm203, %v196, %v200
  %v205 = vand.u32 2147483647, %v195
  %vm206 = vcmp.eq.f32.partialorder %v205, 8.507059e+37
  %v207 = vand.u32 %v195, 2147483648
  %v208 = vor.u32 1.1754944e-38, %v207
  %v209 = vsel %vm206, %v208, %v204
  %v210 = vmul.f32 %v188, %v209
  %211 = vst [vmem:[%s7] sm:$0xf] %v210
  // Predicated region
  $region30: #{_policy_forward_impl.1} parent=0 // pred_check
    _
  $region31: #{_policy_forward_impl.1} parent=0 // pred_check_branch
    %213 = sbr.rel (0) target = $region33
  $region32: #{_policy_forward_impl.1} parent=0 // pred_region
    _
  $region33: #{_policy_forward_impl.1} parent=0 // pred_fallthru
    _
  // Predicated region
  $region34: #{_policy_forward_impl.1} parent=0 // pred_check
    _
  $region35: #{_policy_forward_impl.1} parent=0 // pred_check_branch
    %215 = sbr.rel (0) target = $region37
  $region36: #{_policy_forward_impl.1} parent=0 // pred_region
    _
  $region37: #{_policy_forward_impl.1} parent=0 // pred_fallthru
    _

</llo_original>
